<compile_context>
chip_gen: v7x
topology: tpu7x:2x2x1
jax: 0.10.0
libtpu: 0.0.40
codegen_flags: <defaults>
</compile_context>

<pallas_src>
import jax
import jax.numpy as jnp
from jax.experimental import pallas as pl
from jax.experimental.pallas import tpu as pltpu


def _round_up(n, m):
    return ((n + m - 1) // m) * m


def _pick_block_rows(B):
    # Small batches: a single grid step (per-step pipeline overhead dominates).
    if B <= 128:
        return _round_up(B, 8)
    # Mid batches: grid of exactly 2 (even -> both v7x TensorCores get work),
    # with 128-row-aligned tiles so the lane-dense output blocks stay aligned.
    if B <= 1024:
        return _round_up(pl.cdiv(B, 2), 128)
    # Large batches: 512-row tiles keep the MXU busy despite the K=32 layer-1
    # contraction and amortize per-step overhead; VMEM use stays ~1-2 MiB.
    return 512


def _critic_kernel(x_ref, w1_ref, b1_ref, w2_ref, b2_ref, w3_ref, b3_ref, o_ref):
    x = x_ref[...]
    if x.dtype != jnp.bfloat16:            # skip cast if producer already emits bf16
        x = x.astype(jnp.bfloat16)
    # Layer 1: Linear(state_dim, 512) + ReLU (bf16 MXU inputs, f32 accumulation).
    h1 = jnp.dot(x, w1_ref[...], preferred_element_type=jnp.float32)
    h1 = jnp.maximum(h1 + b1_ref[...], 0.0)
    # Layer 2: Linear(512, 128) + ReLU.
    h2 = jnp.dot(h1.astype(jnp.bfloat16), w2_ref[...],
                 preferred_element_type=jnp.float32)
    h2 = jnp.maximum(h2 + b2_ref[...], 0.0)
    # Layer 3: Linear(128, 1) emitted as a lane-dense row.  Contract the hidden
    # axis of W3 (1, 128) against the hidden axis of h2 (bt, 128) -> (1, bt),
    # so the output store is a single unmasked vst per grid step.
    row = jax.lax.dot_general(
        w3_ref[...], h2,
        dimension_numbers=(((1,), (1,)), ((), ())),
        preferred_element_type=jnp.float32)
    o_ref[...] = row + b3_ref[0, 0]         # b3 scalar from SMEM


def critic_forward_batch(states, params, *, block_rows=None):
    """Batched critic: states (B, state_dim) -> values (B, 1)."""
    if states.dtype != jnp.bfloat16:        # accept bf16 as-is; everything else -> f32
        states = states.astype(jnp.float32)
    B, S = states.shape

    if block_rows is None:
        bt = _pick_block_rows(B)
    else:
        bt = _round_up(block_rows, 8)
        if bt < B:                          # multi-step grid -> keep lane blocks aligned
            bt = _round_up(bt, 128)
    B_pad = _round_up(B, bt)
    if B_pad != B:
        states = jnp.pad(states, ((0, B_pad - B), (0, 0)))
    n_blocks = B_pad // bt

    W1, b1 = params["W1"], params["b1"]
    W2, b2 = params["W2"], params["b2"]
    W3, b3 = params["W3"], params["b3"]

    flops = 2 * B_pad * (S * 512 + 512 * 128 + 128)
    bytes_accessed = int(
        W1.size * W1.dtype.itemsize + W2.size * W2.dtype.itemsize
        + W3.size * 4 + b1.size * 4 + b2.size * 4 + b3.size * 4
        + B_pad * S * states.dtype.itemsize + B_pad * 4)

    rep = lambda shape: pl.BlockSpec(shape, lambda i: (0, 0))  # weights resident every step

    out = pl.pallas_call(
        _critic_kernel,
        out_shape=jax.ShapeDtypeStruct((1, B_pad), jnp.float32),
        grid=(n_blocks,),
        in_specs=[
            pl.BlockSpec((bt, S), lambda i: (i, 0)),            # streamed states tile
            rep(W1.shape), rep(b1.shape),
            rep(W2.shape), rep(b2.shape),
            rep(W3.shape),
            pl.BlockSpec(memory_space=pltpu.MemorySpace.SMEM),  # b3 scalar in SMEM
        ],
        out_specs=pl.BlockSpec((1, bt), lambda i: (0, i)),      # lane-dense output row slab
        compiler_params=pltpu.CompilerParams(
            dimension_semantics=("parallel",)),
        cost_estimate=pl.CostEstimate(
            flops=flops, transcendentals=0, bytes_accessed=bytes_accessed),
    )(states, W1, b1, W2, b2, W3, b3)
    return out[0, :B].reshape(B, 1)


def critic_forward(X, params, *, use_pallas=True):
    """Pallas equivalent of Critic.forward: uses X[0] only, returns shape (1,).

    Per the perf review, a single-state (B=1) pallas_call is pure launch/DMA
    overhead; in an RL loop either batch states into critic_forward_batch or set
    use_pallas=False to let plain XLA handle the lone row.
    """
    state = jnp.reshape(X[0], (1, -1))
    if use_pallas:
        return critic_forward_batch(state, params)[0]
    return critic_reference(state, params).reshape((1,))


def init_params(key, state_dim):
    """Deterministic synthetic init (shapes follow the nn.Linear layers), f32."""
    k1, k2, k3, k4, k5, k6 = jax.random.split(key, 6)

    def lin(kw, kb, fan_in, fan_out):
        bound = 1.0 / jnp.sqrt(fan_in)
        W = jax.random.uniform(kw, (fan_in, fan_out), jnp.float32, -bound, bound)
        b = jax.random.uniform(kb, (1, fan_out), jnp.float32, -bound, bound)
        return W, b

    W1, b1 = lin(k1, k2, state_dim, 512)
    W2, b2 = lin(k3, k4, 512, 128)
    W3, b3 = lin(k5, k6, 128, 1)
    return {"W1": W1, "b1": b1, "W2": W2, "b2": b2,
            "W3": W3.reshape(1, 128), "b3": b3.reshape(1, 1)}


def to_pallas_params(p):
    """bf16 storage for the MXU-facing weights; biases / head row stay f32."""
    return {"W1": p["W1"].astype(jnp.bfloat16), "b1": p["b1"],
            "W2": p["W2"].astype(jnp.bfloat16), "b2": p["b2"],
            "W3": p["W3"], "b3": p["b3"]}


def critic_reference(states, params):
    """Pure-JAX reference with the same bf16-weight / f32-accumulate math."""
    W1 = params["W1"].astype(jnp.bfloat16)
    W2 = params["W2"].astype(jnp.bfloat16)
    x = states.astype(jnp.float32).astype(jnp.bfloat16)
    h1 = jnp.maximum(
        jnp.dot(x, W1, preferred_element_type=jnp.float32) + params["b1"], 0.0)
    h2 = jnp.maximum(
        jnp.dot(h1.astype(jnp.bfloat16), W2,
                preferred_element_type=jnp.float32) + params["b2"], 0.0)
    return jnp.sum(h2 * params["W3"], axis=-1, keepdims=True) + params["b3"]


def critic_reference_f32(states, params_f32):
    """Pure f32 reference matching the original PyTorch module numerics."""
    x = states.astype(jnp.float32)
    h1 = jnp.maximum(jnp.dot(x, params_f32["W1"]) + params_f32["b1"], 0.0)
    h2 = jnp.maximum(jnp.dot(h1, params_f32["W2"]) + params_f32["b2"], 0.0)
    return jnp.sum(h2 * params_f32["W3"], axis=-1, keepdims=True) + params_f32["b3"]


if __name__ == "__main__":
    state_dim = 32
    key = jax.random.PRNGKey(0)
    k_params, k_x, k_small, k_mid = jax.random.split(key, 4)

    params_f32 = init_params(k_params, state_dim)
    params = to_pallas_params(params_f32)

    # Original module semantics: forward(X) uses X[0] only -> value of shape (1,).
    X = jax.random.normal(k_x, (2, state_dim), dtype=jnp.float32)
    out_single = jax.block_until_ready(critic_forward(X, params))
    ref_single = critic_reference(X[0:1], params).reshape((1,))
    assert out_single.shape == (1,)
    assert jnp.allclose(out_single, ref_single, atol=1e-2, rtol=1e-2)
    # Plain-XLA single-state path (review: don't route B=1 through pallas in prod).
    out_single_xla = critic_forward(X, params, use_pallas=False)
    assert jnp.allclose(out_single, out_single_xla, atol=1e-2, rtol=1e-2)

    # Small batch: single grid step (bt = B_pad = 16).
    s16 = jax.random.normal(k_small, (16, state_dim), dtype=jnp.float32)
    out16 = jax.block_until_ready(critic_forward_batch(s16, params))
    assert out16.shape == (16, 1)
    assert jnp.allclose(out16, critic_reference(s16, params), atol=1e-2, rtol=1e-2)
    # Also validate against the original f32 weights (bf16 storage precision).
    assert jnp.allclose(out16, critic_reference_f32(s16, params_f32),
                        atol=6e-2, rtol=6e-2)

    # Mid batch: exercises the multi-step, even grid (2 steps of 128 rows).
    s200 = jax.random.normal(k_mid, (200, state_dim), dtype=jnp.float32)
    out200 = jax.block_until_ready(critic_forward_batch(s200, params))
    assert out200.shape == (200, 1)
    assert jnp.allclose(out200, critic_reference(s200, params), atol=1e-2, rtol=1e-2)

    print("KERNEL_OK")
</pallas_src>

<mosaic_0001>
module attributes {stable_mosaic.version = 11 : i64} {
  func.func @_critic_kernel(%arg0: i32, %arg1: memref<8x32xf32, #tpu.memory_space<vmem>>, %arg2: memref<32x512xbf16, #tpu.memory_space<vmem>>, %arg3: memref<1x512xf32, #tpu.memory_space<vmem>>, %arg4: memref<512x128xbf16, #tpu.memory_space<vmem>>, %arg5: memref<1x128xf32, #tpu.memory_space<vmem>>, %arg6: memref<1x128xf32, #tpu.memory_space<vmem>>, %arg7: memref<1x1xf32, #tpu.memory_space<smem>>, %arg8: memref<1x8xf32, #tpu.memory_space<vmem>>) attributes {dimension_semantics = [#tpu.dimension_semantics<parallel>], iteration_bounds = array<i64: 1>, scalar_prefetch = 0 : i64, scratch_operands = 0 : i64, tpu.core_type = #tpu.core_type<tc>, window_params = [{transform_indices = @transform_0, window_bounds = array<i64: 8, 32>}, {pipeline_mode = #tpu.pipeline_mode<synchronous>, transform_indices = @transform_1, window_bounds = array<i64: 32, 512>}, {pipeline_mode = #tpu.pipeline_mode<synchronous>, transform_indices = @transform_2, window_bounds = array<i64: 1, 512>}, {pipeline_mode = #tpu.pipeline_mode<synchronous>, transform_indices = @transform_3, window_bounds = array<i64: 512, 128>}, {pipeline_mode = #tpu.pipeline_mode<synchronous>, transform_indices = @transform_4, window_bounds = array<i64: 1, 128>}, {pipeline_mode = #tpu.pipeline_mode<synchronous>, transform_indices = @transform_5, window_bounds = array<i64: 1, 128>}, {transform_indices = @transform_6, window_bounds = array<i64: 1, 1>}, {transform_indices = @transform_7, window_bounds = array<i64: 1, 8>}]} {
    %c0 = arith.constant 0 : index
    %c0_0 = arith.constant 0 : index
    %0 = vector.load %arg1[%c0, %c0_0] : memref<8x32xf32, #tpu.memory_space<vmem>>, vector<8x32xf32>
    %1 = arith.truncf %0 : vector<8x32xf32> to vector<8x32xbf16>
    %c0_1 = arith.constant 0 : index
    %c0_2 = arith.constant 0 : index
    %2 = vector.load %arg2[%c0_1, %c0_2] : memref<32x512xbf16, #tpu.memory_space<vmem>>, vector<32x512xbf16>
    %cst = arith.constant dense<0.000000e+00> : vector<8x512xf32>
    %3 = tpu.matmul %1, %2, %cst {dimension_numbers = #tpu.dot_dimension_numbers<[1], [0], [0], [1], [0, 0, 1, 1], [], []>} : vector<8x32xbf16>, vector<32x512xbf16>, vector<8x512xf32> -> vector<8x512xf32>
    %c0_3 = arith.constant 0 : index
    %c0_4 = arith.constant 0 : index
    %4 = vector.load %arg3[%c0_3, %c0_4] : memref<1x512xf32, #tpu.memory_space<vmem>>, vector<1x512xf32>
    %5 = vector.broadcast %4 : vector<1x512xf32> to vector<8x512xf32>
    %6 = arith.addf %3, %5 : vector<8x512xf32>
    %cst_5 = arith.constant 0.000000e+00 : f32
    %7 = vector.broadcast %cst_5 : f32 to vector<8x512xf32>
    %8 = arith.maximumf %6, %7 : vector<8x512xf32>
    %9 = arith.truncf %8 : vector<8x512xf32> to vector<8x512xbf16>
    %c0_6 = arith.constant 0 : index
    %c0_7 = arith.constant 0 : index
    %10 = vector.load %arg4[%c0_6, %c0_7] : memref<512x128xbf16, #tpu.memory_space<vmem>>, vector<512x128xbf16>
    %cst_8 = arith.constant dense<0.000000e+00> : vector<8x128xf32>
    %11 = tpu.matmul %9, %10, %cst_8 {dimension_numbers = #tpu.dot_dimension_numbers<[1], [0], [0], [1], [0, 0, 1, 1], [], []>} : vector<8x512xbf16>, vector<512x128xbf16>, vector<8x128xf32> -> vector<8x128xf32>
    %c0_9 = arith.constant 0 : index
    %c0_10 = arith.constant 0 : index
    %12 = vector.load %arg5[%c0_9, %c0_10] : memref<1x128xf32, #tpu.memory_space<vmem>>, vector<1x128xf32>
    %13 = vector.broadcast %12 : vector<1x128xf32> to vector<8x128xf32>
    %14 = arith.addf %11, %13 : vector<8x128xf32>
    %cst_11 = arith.constant 0.000000e+00 : f32
    %15 = vector.broadcast %cst_11 : f32 to vector<8x128xf32>
    %16 = arith.maximumf %14, %15 : vector<8x128xf32>
    %c0_12 = arith.constant 0 : index
    %c0_13 = arith.constant 0 : index
    %17 = vector.load %arg6[%c0_12, %c0_13] : memref<1x128xf32, #tpu.memory_space<vmem>>, vector<1x128xf32>
    %cst_14 = arith.constant dense<0.000000e+00> : vector<1x8xf32>
    %18 = tpu.matmul %17, %16, %cst_14 {dimension_numbers = #tpu.dot_dimension_numbers<[1], [1], [0], [0], [0, 0, 1, 0], [], []>} : vector<1x128xf32>, vector<8x128xf32>, vector<1x8xf32> -> vector<1x8xf32>
    %c0_15 = arith.constant 0 : index
    %c0_16 = arith.constant 0 : index
    %19 = memref.load %arg7[%c0_15, %c0_16] : memref<1x1xf32, #tpu.memory_space<smem>>
    %20 = vector.broadcast %19 : f32 to vector<1x8xf32>
    %21 = arith.addf %18, %20 : vector<1x8xf32>
    %c0_17 = arith.constant 0 : index
    %c0_18 = arith.constant 0 : index
    %22 = vector.load %arg8[%c0_17, %c0_18] : memref<1x8xf32, #tpu.memory_space<vmem>>, vector<1x8xf32>
    tpu.vector_store %arg8[%c0_17, %c0_18], %21 {strides = array<i32>} : memref<1x8xf32, #tpu.memory_space<vmem>>, vector<1x8xf32>,
    return
  }
  func.func @transform_0(%arg0: i32) -> (i32, i32) {
    %c0_i32 = arith.constant 0 : i32
    %c0_i32_0 = arith.constant 0 : i32
    return %arg0, %c0_i32 : i32, i32
  }
  func.func @transform_1(%arg0: i32) -> (i32, i32) {
    %c0_i32 = arith.constant 0 : i32
    %c0_i32_0 = arith.constant 0 : i32
    %c0_i32_1 = arith.constant 0 : i32
    return %c0_i32, %c0_i32_0 : i32, i32
  }
  func.func @transform_2(%arg0: i32) -> (i32, i32) {
    %c0_i32 = arith.constant 0 : i32
    %c0_i32_0 = arith.constant 0 : i32
    %c0_i32_1 = arith.constant 0 : i32
    return %c0_i32, %c0_i32_0 : i32, i32
  }
  func.func @transform_3(%arg0: i32) -> (i32, i32) {
    %c0_i32 = arith.constant 0 : i32
    %c0_i32_0 = arith.constant 0 : i32
    %c0_i32_1 = arith.constant 0 : i32
    return %c0_i32, %c0_i32_0 : i32, i32
  }
  func.func @transform_4(%arg0: i32) -> (i32, i32) {
    %c0_i32 = arith.constant 0 : i32
    %c0_i32_0 = arith.constant 0 : i32
    %c0_i32_1 = arith.constant 0 : i32
    return %c0_i32, %c0_i32_0 : i32, i32
  }
  func.func @transform_5(%arg0: i32) -> (i32, i32) {
    %c0_i32 = arith.constant 0 : i32
    %c0_i32_0 = arith.constant 0 : i32
    %c0_i32_1 = arith.constant 0 : i32
    return %c0_i32, %c0_i32_0 : i32, i32
  }
  func.func @transform_6(%arg0: i32) -> (i32, i32) {
    %c0_i32 = arith.constant 0 : i32
    %c0_i32_0 = arith.constant 0 : i32
    %c0_i32_1 = arith.constant 0 : i32
    return %c0_i32, %c0_i32_0 : i32, i32
  }
  func.func @transform_7(%arg0: i32) -> (i32, i32) {
    %c0_i32 = arith.constant 0 : i32
    %c0_i32_0 = arith.constant 0 : i32
    return %c0_i32, %arg0 : i32, i32
  }
}

</mosaic_0001>

<llo_original>
// kernel: tpu_custom_call.1
$region0: #{tpu_custom_call.1}
  #allocation0 [shape = 'u32[]', space=smem, size = 0x4, offset = 0x4, fixed_abs, tag = 'smem constant byte address 0x4 - core index']
  #allocation1 [shape = 'u32[144,128]{1,0:T(1,128)}', space=vmem, size = 0x12000, scoped, tag = 'internal scratch']
  #allocation2 [shape = 'f32[1,1]{1,0:T(1,128)S(6)}', space=smem, size = 0x200, scoped, tag = 'scoped memory for tpu_custom_call.1']
  %s0 = inlined_call_operand.hbm [shape: f32[8,32], index: 0, kind: input, shape index: {}]
  %s1 = inlined_call_operand.hbm [shape: bf16[32,512], index: 1, kind: input, shape index: {}]
  %s2 = inlined_call_operand.vmem [shape: f32[1,512], index: 2, kind: input, shape index: {}]
  %s3 = inlined_call_operand.hbm [shape: bf16[512,128], index: 3, kind: input, shape index: {}]
  %s4 = inlined_call_operand.vmem [shape: f32[1,128], index: 4, kind: input, shape index: {}]
  %s5 = inlined_call_operand.vmem [shape: f32[1,128], index: 5, kind: input, shape index: {}]
  %s6 = inlined_call_operand.<no memory space> [shape: f32[1,1], index: 6, kind: input, shape index: {}]
  %s7 = inlined_call_operand.hbm [shape: f32[1,8], index: 7, kind: output, shape index: {}]
  %s8 = sld [smem:[#allocation0]]
  $region50: #{tpu_custom_call.1} parent=0
    _
  %s10 = ssub.s32 1, %s8
  %s11 = scalar_select 0, %s10, %s8
  %12 = sst [smem:[#allocation2]] %s6
  $region1: #{tpu_custom_call.1} parent=0
    #allocation3 [shape = 'u8[4096]{0}', space=vmem, size = 0x1000, scoped, tag = 'input window, operand 0, single buffered']
    #allocation4 [shape = 's32[1]{0}', space=sflag, size = 0x4, scoped, tag = 'scoped memory for tpu_custom_call.1']
    #allocation5 [shape = 's32[1]{0}', space=sflag, size = 0x4, scoped, tag = 'scoped memory for tpu_custom_call.1']
    #allocation6 [shape = 'u8[32768]{0}', space=vmem, size = 0x8000, scoped, tag = 'input window, operand 1, single buffered']
    #allocation7 [shape = 's32[1]{0}', space=sflag, size = 0x4, scoped, tag = 'scoped memory for tpu_custom_call.1']
    #allocation8 [shape = 'u8[131072]{0}', space=vmem, size = 0x20000, scoped, tag = 'input window, operand 3, single buffered']
    #allocation9 [shape = 'u8[512]{0}', space=vmem, size = 0x400, scoped, tag = 'output window, operand 0, single buffered']
    %13 = vsyncpa [#allocation4], 0
    %14 = vsyncpa [#allocation7], 0
    %15 = vsyncpa [#allocation5], 0
    // Predicated region
    $region2: #{tpu_custom_call.1} parent=1 // pred_check
      _
    $region3: #{tpu_custom_call.1} parent=1 // pred_check_branch
      %17 = sbr.rel (0) target = $region5
    $region4: #{tpu_custom_call.1} parent=1 // pred_region
      %s19 = ssub.s32 128, 128
      %20 = vsyncadd [#allocation4], %s19
      %s22 = sshll.u32 [#allocation3], 4
      %s23 = int_to_ptr.vmem [resolvable:$true] %s22
      %25 = dma.hbm_to_vmem [thread:$0]  %s0, 128, %s23, [#allocation4]
    $region5: #{tpu_custom_call.1} parent=1 // pred_fallthru
      _
    // Predicated region
    $region6: #{tpu_custom_call.1} parent=1 // pred_check
      _
    $region7: #{tpu_custom_call.1} parent=1 // pred_check_branch
      %27 = sbr.rel (0) target = $region9
    $region8: #{tpu_custom_call.1} parent=1 // pred_region
      %s29 = ssub.s32 1024, 1024
      %30 = vsyncadd [#allocation7], %s29
      %s31 = sshll.u32 [#allocation6], 4
      %s32 = int_to_ptr.vmem [resolvable:$true] %s31
      %37 = dma.hbm_to_vmem [thread:$0]  %s1, 1024, %s32, [#allocation7], 256, 256, 16
    $region9: #{tpu_custom_call.1} parent=1 // pred_fallthru
      _
    // Predicated region
    $region10: #{tpu_custom_call.1} parent=1 // pred_check
      _
    $region11: #{tpu_custom_call.1} parent=1 // pred_check_branch
      %39 = sbr.rel (0) target = $region13
    $region12: #{tpu_custom_call.1} parent=1 // pred_region
      _
    $region13: #{tpu_custom_call.1} parent=1 // pred_fallthru
      _
    // Predicated region
    $region14: #{tpu_custom_call.1} parent=1 // pred_check
      _
    $region15: #{tpu_custom_call.1} parent=1 // pred_check_branch
      %41 = sbr.rel (0) target = $region17
    $region16: #{tpu_custom_call.1} parent=1 // pred_region
      %s43 = ssub.s32 4096, 4096
      %44 = vsyncadd [#allocation7], %s43
      %s45 = sshll.u32 [#allocation8], 4
      %s46 = int_to_ptr.vmem [resolvable:$true] %s45
      %51 = dma.hbm_to_vmem [thread:$0]  %s3, 4096, %s46, [#allocation7], 64, 64, 4
    $region17: #{tpu_custom_call.1} parent=1 // pred_fallthru
      _
    // Predicated region
    $region18: #{tpu_custom_call.1} parent=1 // pred_check
      _
    $region19: #{tpu_custom_call.1} parent=1 // pred_check_branch
      %53 = sbr.rel (0) target = $region21
    $region20: #{tpu_custom_call.1} parent=1 // pred_region
      _
    $region21: #{tpu_custom_call.1} parent=1 // pred_fallthru
      _
    // Predicated region
    $region22: #{tpu_custom_call.1} parent=1 // pred_check
      _
    $region23: #{tpu_custom_call.1} parent=1 // pred_check_branch
      %55 = sbr.rel (0) target = $region25
    $region24: #{tpu_custom_call.1} parent=1 // pred_region
      _
    $region25: #{tpu_custom_call.1} parent=1 // pred_fallthru
      _
    // Predicated region
    $region26: #{tpu_custom_call.1} parent=1 // pred_check
      _
    $region27: #{tpu_custom_call.1} parent=1 // pred_check_branch
      %57 = sbr.rel (0) target = $region29
    $region28: #{tpu_custom_call.1} parent=1 // pred_region
      _
    $region29: #{tpu_custom_call.1} parent=1 // pred_fallthru
      _
    // Predicated region
    $region30: #{tpu_custom_call.1} parent=1 // pred_check
      _
    $region31: #{tpu_custom_call.1} parent=1 // pred_check_branch
      %59 = sbr.rel (0) target = $region33
    $region32: #{tpu_custom_call.1} parent=1 // pred_region
      %60 = dma.done [#allocation4], 128
    $region33: #{tpu_custom_call.1} parent=1 // pred_fallthru
      _
    // Predicated region
    $region34: #{tpu_custom_call.1} parent=1 // pred_check
      _
    $region35: #{tpu_custom_call.1} parent=1 // pred_check_branch
      %62 = sbr.rel (0) target = $region37
    $region36: #{tpu_custom_call.1} parent=1 // pred_region
      %63 = dma.done [#allocation7], 1024
    $region37: #{tpu_custom_call.1} parent=1 // pred_fallthru
      _
    // Predicated region
    $region38: #{tpu_custom_call.1} parent=1 // pred_check
      _
    $region39: #{tpu_custom_call.1} parent=1 // pred_check_branch
      %65 = sbr.rel (0) target = $region41
    $region40: #{tpu_custom_call.1} parent=1 // pred_region
      %66 = dma.done [#allocation7], 4096
    $region41: #{tpu_custom_call.1} parent=1 // pred_fallthru
      _
    %v68 = vld [vmem:[#allocation3] sm:$0xff]
    %v69 = vpack.c.bf16 %v68, %v68
    %v70 = vld [vmem:[#allocation6] sm:$0xff]
    %v71 = vld [vmem:[#allocation6 + $0x8] sm:$0xff]
    %v72 = vld [vmem:[#allocation6 + $0x10] sm:$0xff]
    %v73 = vld [vmem:[#allocation6 + $0x18] sm:$0xff]
    %v74 = vld [vmem:[#allocation6 + $0x20] sm:$0xff]
    %v75 = vld [vmem:[#allocation6 + $0x28] sm:$0xff]
    %v76 = vld [vmem:[#allocation6 + $0x30] sm:$0xff]
    %v77 = vld [vmem:[#allocation6 + $0x38] sm:$0xff]
    %v78 = vld [vmem:[%s2] sm:$0xf]
    %v80 = vlaneseq
    %v81 = vshrl.u32 %v80, 7
    %v82 = vsub.s32 0, %v81
    %v83 = vrot.slane %v78, %v82
    %v84 = vlaneseq
    %v85 = vshrl.u32 %v84, 7
    %v86 = vsub.s32 1, %v85
    %v87 = vrot.slane %v78, %v86
    %v88 = vlaneseq
    %v89 = vshrl.u32 %v88, 7
    %v90 = vsub.s32 2, %v89
    %v91 = vrot.slane %v78, %v90
    %v92 = vlaneseq
    %v93 = vshrl.u32 %v92, 7
    %v94 = vsub.s32 3, %v93
    %v95 = vrot.slane %v78, %v94
    %v108 = vunpack.c.l.b16 %v70
    %v109 = vunpack.c.h.b16 %v70
    %v110 = vunpack.c.l.b16 %v71
    %v111 = vunpack.c.h.b16 %v71
    %v112 = vunpack.c.l.b16 %v72
    %v113 = vunpack.c.h.b16 %v72
    %v114 = vunpack.c.l.b16 %v73
    %v115 = vunpack.c.h.b16 %v73
    %v116 = vunpack.c.l.b16 %v74
    %v117 = vunpack.c.h.b16 %v74
    %v118 = vunpack.c.l.b16 %v75
    %v119 = vunpack.c.h.b16 %v75
    %v120 = vunpack.c.l.b16 %v76
    %v121 = vunpack.c.h.b16 %v76
    %v122 = vunpack.c.l.b16 %v77
    %v123 = vunpack.c.h.b16 %v77
    %v124 = vpack.c.b16 %v112, %v108
    %v125 = vpack.c.b16 %v113, %v109
    %v126 = vpack.c.b16 %v114, %v110
    %v127 = vpack.c.b16 %v115, %v111
    %v128 = vpack.c.b16 %v120, %v116
    %v129 = vpack.c.b16 %v121, %v117
    %v130 = vpack.c.b16 %v122, %v118
    %v131 = vpack.c.b16 %v123, %v119
    %vm140 = vcmask 261120
    %v142 = vsel %vm140, %v69, 0
    %144 = vmatprep.subr.bf16.mxu0 %v125
    %145 = vmatpush1.bf16.msra.mxu0 %v124
    %146 = vmatprep.subr.bf16.mxu0 %v129
    %147 = vmatpush1.bf16.msra.mxu0 %v128
    %148 = vmatprep.subr.bf16.mxu0 0
    %149 = vmatpush1.bf16.msra.mxu0 0
    %150 = vmatprep.subr.bf16.mxu0 0
    %151 = vmatpush1.bf16.msra.mxu0 0
    %152 = vmatprep.subr.bf16.mxu0 0
    %153 = vmatpush1.bf16.msra.mxu0 0
    %154 = vmatprep.subr.bf16.mxu0 0
    %155 = vmatpush1.bf16.msra.mxu0 0
    %156 = vmatprep.subr.bf16.mxu0 0
    %157 = vmatpush1.bf16.msra.mxu0 0
    %158 = vmatprep.subr.bf16.mxu0 0
    %159 = vmatpush1.bf16.msra.mxu0 0
    %160 = vmatprep.subr.bf16.mxu0 0
    %161 = vmatpush1.bf16.msra.mxu0 0
    %162 = vmatprep.subr.bf16.mxu0 0
    %163 = vmatpush1.bf16.msra.mxu0 0
    %164 = vmatprep.subr.bf16.mxu0 0
    %165 = vmatpush1.bf16.msra.mxu0 0
    %166 = vmatprep.subr.bf16.mxu0 0
    %167 = vmatpush1.bf16.msra.mxu0 0
    %168 = vmatprep.subr.bf16.mxu0 0
    %169 = vmatpush1.bf16.msra.mxu0 0
    %170 = vmatprep.subr.bf16.mxu0 0
    %171 = vmatpush1.bf16.msra.mxu0 0
    %172 = vmatprep.subr.bf16.mxu0 0
    %173 = vmatpush1.bf16.msra.mxu0 0
    %174 = vmatprep.subr.bf16.mxu0 0
    %175 = vmatpush1.bf16.msra.mxu0 0
    %176 = vmatprep.mubr.bf16.mxu0 0
    %177 = vmatmul.mubr.bf16.gmra.mrb[0].mxu0 %v142
    %v178 = vpop.f32.mrb[0].mxu0
    %v179 = vadd.f32 %v83, %v178
    %v180 = vpop.f32.mrb[0].mxu0
    %v181 = vadd.f32 %v87, %v180
    %v182 = vpop.f32.mrb[0].mxu0
    %v183 = vpop.f32.mrb[0].mxu0
    %184 = vdwg.mxu0
    %185 = vmatprep.subr.bf16.mxu0 %v127
    %186 = vmatpush1.bf16.msra.mxu0 %v126
    %187 = vmatprep.subr.bf16.mxu0 %v131
    %188 = vmatpush1.bf16.msra.mxu0 %v130
    %189 = vmatprep.subr.bf16.mxu0 0
    %190 = vmatpush1.bf16.msra.mxu0 0
    %191 = vmatprep.subr.bf16.mxu0 0
    %192 = vmatpush1.bf16.msra.mxu0 0
    %193 = vmatprep.subr.bf16.mxu0 0
    %194 = vmatpush1.bf16.msra.mxu0 0
    %195 = vmatprep.subr.bf16.mxu0 0
    %196 = vmatpush1.bf16.msra.mxu0 0
    %197 = vmatprep.subr.bf16.mxu0 0
    %198 = vmatpush1.bf16.msra.mxu0 0
    %199 = vmatprep.subr.bf16.mxu0 0
    %200 = vmatpush1.bf16.msra.mxu0 0
    %201 = vmatprep.subr.bf16.mxu0 0
    %202 = vmatpush1.bf16.msra.mxu0 0
    %203 = vmatprep.subr.bf16.mxu0 0
    %204 = vmatpush1.bf16.msra.mxu0 0
    %205 = vmatprep.subr.bf16.mxu0 0
    %206 = vmatpush1.bf16.msra.mxu0 0
    %207 = vmatprep.subr.bf16.mxu0 0
    %208 = vmatpush1.bf16.msra.mxu0 0
    %209 = vmatprep.subr.bf16.mxu0 0
    %210 = vmatpush1.bf16.msra.mxu0 0
    %211 = vmatprep.subr.bf16.mxu0 0
    %212 = vmatpush1.bf16.msra.mxu0 0
    %213 = vmatprep.subr.bf16.mxu0 0
    %214 = vmatpush1.bf16.msra.mxu0 0
    %215 = vmatprep.subr.bf16.mxu0 0
    %216 = vmatpush1.bf16.msra.mxu0 0
    %217 = vmatprep.mubr.bf16.mxu0 0
    %218 = vmatmul.mubr.bf16.gmra.mrb[0].mxu0 %v142
    %v219 = vpop.f32.mrb[0].mxu0
    %v220 = vadd.f32 %v91, %v219
    %v221 = vpop.f32.mrb[0].mxu0
    %v222 = vadd.f32 %v95, %v221
    %v223 = vpop.f32.mrb[0].mxu0
    %v224 = vpop.f32.mrb[0].mxu0
    %225 = vdwg.mxu0
    %v226 = vmax.f32 %v179, 0.0
    %v227 = vmax.f32 %v181, 0.0
    %v228 = vmax.f32 %v220, 0.0
    %v229 = vmax.f32 %v222, 0.0
    %v230 = vpack.c.bf16 %v226, %v226
    %v231 = vpack.c.bf16 %v227, %v227
    %v232 = vpack.c.bf16 %v228, %v228
    %v233 = vpack.c.bf16 %v229, %v229
    %v234 = vld [vmem:[#allocation8] sm:$0xf]
    %v235 = vld [vmem:[#allocation8 + $0x4] sm:$0xf]
    %v236 = vld [vmem:[#allocation8 + $0x8] sm:$0xf]
    %v237 = vld [vmem:[#allocation8 + $0xc] sm:$0xf]
    %v238 = vld [vmem:[#allocation8 + $0x10] sm:$0xf]
    %v239 = vld [vmem:[#allocation8 + $0x14] sm:$0xf]
    %v240 = vld [vmem:[#allocation8 + $0x18] sm:$0xf]
    %v241 = vld [vmem:[#allocation8 + $0x1c] sm:$0xf]
    %v242 = vld [vmem:[#allocation8 + $0x20] sm:$0xf]
    %v243 = vld [vmem:[#allocation8 + $0x24] sm:$0xf]
    %v244 = vld [vmem:[#allocation8 + $0x28] sm:$0xf]
    %v245 = vld [vmem:[#allocation8 + $0x2c] sm:$0xf]
    %v246 = vld [vmem:[#allocation8 + $0x30] sm:$0xf]
    %v247 = vld [vmem:[#allocation8 + $0x34] sm:$0xf]
    %v248 = vld [vmem:[#allocation8 + $0x38] sm:$0xf]
    %v249 = vld [vmem:[#allocation8 + $0x3c] sm:$0xf]
    %v250 = vld [vmem:[#allocation8 + $0x40] sm:$0xf]
    %v251 = vld [vmem:[#allocation8 + $0x44] sm:$0xf]
    %v252 = vld [vmem:[#allocation8 + $0x48] sm:$0xf]
    %v253 = vld [vmem:[#allocation8 + $0x4c] sm:$0xf]
    %v254 = vld [vmem:[#allocation8 + $0x50] sm:$0xf]
    %v255 = vld [vmem:[#allocation8 + $0x54] sm:$0xf]
    %v256 = vld [vmem:[#allocation8 + $0x58] sm:$0xf]
    %v257 = vld [vmem:[#allocation8 + $0x5c] sm:$0xf]
    %v258 = vld [vmem:[#allocation8 + $0x60] sm:$0xf]
    %v259 = vld [vmem:[#allocation8 + $0x64] sm:$0xf]
    %v260 = vld [vmem:[#allocation8 + $0x68] sm:$0xf]
    %v261 = vld [vmem:[#allocation8 + $0x6c] sm:$0xf]
    %v262 = vld [vmem:[#allocation8 + $0x70] sm:$0xf]
    %v263 = vld [vmem:[#allocation8 + $0x74] sm:$0xf]
    %v264 = vld [vmem:[#allocation8 + $0x78] sm:$0xf]
    %v265 = vld [vmem:[#allocation8 + $0x7c] sm:$0xf]
    %v266 = vld [vmem:[#allocation8 + $0x80] sm:$0xf]
    %v267 = vld [vmem:[#allocation8 + $0x84] sm:$0xf]
    %v268 = vld [vmem:[#allocation8 + $0x88] sm:$0xf]
    %v269 = vld [vmem:[#allocation8 + $0x8c] sm:$0xf]
    %v270 = vld [vmem:[#allocation8 + $0x90] sm:$0xf]
    %v271 = vld [vmem:[#allocation8 + $0x94] sm:$0xf]
    %v272 = vld [vmem:[#allocation8 + $0x98] sm:$0xf]
    %v273 = vld [vmem:[#allocation8 + $0x9c] sm:$0xf]
    %v274 = vld [vmem:[#allocation8 + $0xa0] sm:$0xf]
    %v275 = vld [vmem:[#allocation8 + $0xa4] sm:$0xf]
    %v276 = vld [vmem:[#allocation8 + $0xa8] sm:$0xf]
    %v277 = vld [vmem:[#allocation8 + $0xac] sm:$0xf]
    %v278 = vld [vmem:[#allocation8 + $0xb0] sm:$0xf]
    %v279 = vld [vmem:[#allocation8 + $0xb4] sm:$0xf]
    %v280 = vld [vmem:[#allocation8 + $0xb8] sm:$0xf]
    %v281 = vld [vmem:[#allocation8 + $0xbc] sm:$0xf]
    %v282 = vld [vmem:[#allocation8 + $0xc0] sm:$0xf]
    %v283 = vld [vmem:[#allocation8 + $0xc4] sm:$0xf]
    %v284 = vld [vmem:[#allocation8 + $0xc8] sm:$0xf]
    %v285 = vld [vmem:[#allocation8 + $0xcc] sm:$0xf]
    %v286 = vld [vmem:[#allocation8 + $0xd0] sm:$0xf]
    %v287 = vld [vmem:[#allocation8 + $0xd4] sm:$0xf]
    %v288 = vld [vmem:[#allocation8 + $0xd8] sm:$0xf]
    %v289 = vld [vmem:[#allocation8 + $0xdc] sm:$0xf]
    %v290 = vld [vmem:[#allocation8 + $0xe0] sm:$0xf]
    %v291 = vld [vmem:[#allocation8 + $0xe4] sm:$0xf]
    %v292 = vld [vmem:[#allocation8 + $0xe8] sm:$0xf]
    %v293 = vld [vmem:[#allocation8 + $0xec] sm:$0xf]
    %v294 = vld [vmem:[#allocation8 + $0xf0] sm:$0xf]
    %v295 = vld [vmem:[#allocation8 + $0xf4] sm:$0xf]
    %v296 = vld [vmem:[#allocation8 + $0xf8] sm:$0xf]
    %v297 = vld [vmem:[#allocation8 + $0xfc] sm:$0xf]
    %v298 = vld [vmem:[%s4] sm:$0x1]
    %v300 = vlaneseq
    %v301 = vshrl.u32 %v300, 7
    %v302 = vsub.s32 0, %v301
    %v303 = vrot.slane %v298, %v302
    %v369 = vunpack.c.l.b16 %v234
    %v370 = vunpack.c.l.b16 %v235
    %v371 = vunpack.c.l.b16 %v236
    %v372 = vunpack.c.l.b16 %v237
    %v373 = vunpack.c.l.b16 %v238
    %v374 = vunpack.c.l.b16 %v239
    %v375 = vunpack.c.l.b16 %v240
    %v376 = vunpack.c.l.b16 %v241
    %v377 = vunpack.c.l.b16 %v242
    %v378 = vunpack.c.l.b16 %v243
    %v379 = vunpack.c.l.b16 %v244
    %v380 = vunpack.c.l.b16 %v245
    %v381 = vunpack.c.l.b16 %v246
    %v382 = vunpack.c.l.b16 %v247
    %v383 = vunpack.c.l.b16 %v248
    %v384 = vunpack.c.l.b16 %v249
    %v385 = vunpack.c.l.b16 %v250
    %v386 = vunpack.c.l.b16 %v251
    %v387 = vunpack.c.l.b16 %v252
    %v388 = vunpack.c.l.b16 %v253
    %v389 = vunpack.c.l.b16 %v254
    %v390 = vunpack.c.l.b16 %v255
    %v391 = vunpack.c.l.b16 %v256
    %v392 = vunpack.c.l.b16 %v257
    %v393 = vunpack.c.l.b16 %v258
    %v394 = vunpack.c.l.b16 %v259
    %v395 = vunpack.c.l.b16 %v260
    %v396 = vunpack.c.l.b16 %v261
    %v397 = vunpack.c.l.b16 %v262
    %v398 = vunpack.c.l.b16 %v263
    %v399 = vunpack.c.l.b16 %v264
    %v400 = vunpack.c.l.b16 %v265
    %v401 = vunpack.c.l.b16 %v266
    %v402 = vunpack.c.l.b16 %v267
    %v403 = vunpack.c.l.b16 %v268
    %v404 = vunpack.c.l.b16 %v269
    %v405 = vunpack.c.l.b16 %v270
    %v406 = vunpack.c.l.b16 %v271
    %v407 = vunpack.c.l.b16 %v272
    %v408 = vunpack.c.l.b16 %v273
    %v409 = vunpack.c.l.b16 %v274
    %v410 = vunpack.c.l.b16 %v275
    %v411 = vunpack.c.l.b16 %v276
    %v412 = vunpack.c.l.b16 %v277
    %v413 = vunpack.c.l.b16 %v278
    %v414 = vunpack.c.l.b16 %v279
    %v415 = vunpack.c.l.b16 %v280
    %v416 = vunpack.c.l.b16 %v281
    %v417 = vunpack.c.l.b16 %v282
    %v418 = vunpack.c.l.b16 %v283
    %v419 = vunpack.c.l.b16 %v284
    %v420 = vunpack.c.l.b16 %v285
    %v421 = vunpack.c.l.b16 %v286
    %v422 = vunpack.c.l.b16 %v287
    %v423 = vunpack.c.l.b16 %v288
    %v424 = vunpack.c.l.b16 %v289
    %v425 = vunpack.c.l.b16 %v290
    %v426 = vunpack.c.l.b16 %v291
    %v427 = vunpack.c.l.b16 %v292
    %v428 = vunpack.c.l.b16 %v293
    %v429 = vunpack.c.l.b16 %v294
    %v430 = vunpack.c.l.b16 %v295
    %v431 = vunpack.c.l.b16 %v296
    %v432 = vunpack.c.l.b16 %v297
    %v433 = vpack.c.b16 %v370, %v369
    %v434 = vpack.c.b16 %v372, %v371
    %v435 = vpack.c.b16 %v374, %v373
    %v436 = vpack.c.b16 %v376, %v375
    %v437 = vpack.c.b16 %v378, %v377
    %v438 = vpack.c.b16 %v380, %v379
    %v439 = vpack.c.b16 %v382, %v381
    %v440 = vpack.c.b16 %v384, %v383
    %v441 = vpack.c.b16 %v386, %v385
    %v442 = vpack.c.b16 %v388, %v387
    %v443 = vpack.c.b16 %v390, %v389
    %v444 = vpack.c.b16 %v392, %v391
    %v445 = vpack.c.b16 %v394, %v393
    %v446 = vpack.c.b16 %v396, %v395
    %v447 = vpack.c.b16 %v398, %v397
    %v448 = vpack.c.b16 %v400, %v399
    %v449 = vpack.c.b16 %v402, %v401
    %v450 = vpack.c.b16 %v404, %v403
    %v451 = vpack.c.b16 %v406, %v405
    %v452 = vpack.c.b16 %v408, %v407
    %v453 = vpack.c.b16 %v410, %v409
    %v454 = vpack.c.b16 %v412, %v411
    %v455 = vpack.c.b16 %v414, %v413
    %v456 = vpack.c.b16 %v416, %v415
    %v457 = vpack.c.b16 %v418, %v417
    %v458 = vpack.c.b16 %v420, %v419
    %v459 = vpack.c.b16 %v422, %v421
    %v460 = vpack.c.b16 %v424, %v423
    %v461 = vpack.c.b16 %v426, %v425
    %v462 = vpack.c.b16 %v428, %v427
    %v463 = vpack.c.b16 %v430, %v429
    %v464 = vpack.c.b16 %v432, %v431
    %497 = vmatprep.subr.bf16.mxu0 0
    %498 = vmatpush1.bf16.msra.mxu0 %v433
    %499 = vmatprep.subr.bf16.mxu0 0
    %500 = vmatpush1.bf16.msra.mxu0 %v434
    %501 = vmatprep.subr.bf16.mxu0 0
    %502 = vmatpush1.bf16.msra.mxu0 %v435
    %503 = vmatprep.subr.bf16.mxu0 0
    %504 = vmatpush1.bf16.msra.mxu0 %v436
    %505 = vmatprep.subr.bf16.mxu0 0
    %506 = vmatpush1.bf16.msra.mxu0 %v437
    %507 = vmatprep.subr.bf16.mxu0 0
    %508 = vmatpush1.bf16.msra.mxu0 %v438
    %509 = vmatprep.subr.bf16.mxu0 0
    %510 = vmatpush1.bf16.msra.mxu0 %v439
    %511 = vmatprep.subr.bf16.mxu0 0
    %512 = vmatpush1.bf16.msra.mxu0 %v440
    %513 = vmatprep.subr.bf16.mxu0 0
    %514 = vmatpush1.bf16.msra.mxu0 %v441
    %515 = vmatprep.subr.bf16.mxu0 0
    %516 = vmatpush1.bf16.msra.mxu0 %v442
    %517 = vmatprep.subr.bf16.mxu0 0
    %518 = vmatpush1.bf16.msra.mxu0 %v443
    %519 = vmatprep.subr.bf16.mxu0 0
    %520 = vmatpush1.bf16.msra.mxu0 %v444
    %521 = vmatprep.subr.bf16.mxu0 0
    %522 = vmatpush1.bf16.msra.mxu0 %v445
    %523 = vmatprep.subr.bf16.mxu0 0
    %524 = vmatpush1.bf16.msra.mxu0 %v446
    %525 = vmatprep.subr.bf16.mxu0 0
    %526 = vmatpush1.bf16.msra.mxu0 %v447
    %527 = vmatprep.subr.bf16.mxu0 0
    %528 = vmatpush1.bf16.msra.mxu0 %v448
    %529 = vmatprep.mubr.bf16.mxu0 %v231
    %530 = vmatmul.mubr.bf16.gmra.mrb[0].mxu0 %v230
    %v531 = vpop.f32.mrb[0].mxu0
    %v532 = vadd.f32 %v303, %v531
    %v533 = vpop.f32.mrb[0].mxu0
    %v534 = vpop.f32.mrb[0].mxu0
    %v535 = vpop.f32.mrb[0].mxu0
    %536 = vdwg.mxu0
    %537 = vmatprep.subr.bf16.mxu0 0
    %538 = vmatpush1.bf16.msra.mxu0 %v449
    %539 = vmatprep.subr.bf16.mxu0 0
    %540 = vmatpush1.bf16.msra.mxu0 %v450
    %541 = vmatprep.subr.bf16.mxu0 0
    %542 = vmatpush1.bf16.msra.mxu0 %v451
    %543 = vmatprep.subr.bf16.mxu0 0
    %544 = vmatpush1.bf16.msra.mxu0 %v452
    %545 = vmatprep.subr.bf16.mxu0 0
    %546 = vmatpush1.bf16.msra.mxu0 %v453
    %547 = vmatprep.subr.bf16.mxu0 0
    %548 = vmatpush1.bf16.msra.mxu0 %v454
    %549 = vmatprep.subr.bf16.mxu0 0
    %550 = vmatpush1.bf16.msra.mxu0 %v455
    %551 = vmatprep.subr.bf16.mxu0 0
    %552 = vmatpush1.bf16.msra.mxu0 %v456
    %553 = vmatprep.subr.bf16.mxu0 0
    %554 = vmatpush1.bf16.msra.mxu0 %v457
    %555 = vmatprep.subr.bf16.mxu0 0
    %556 = vmatpush1.bf16.msra.mxu0 %v458
    %557 = vmatprep.subr.bf16.mxu0 0
    %558 = vmatpush1.bf16.msra.mxu0 %v459
    %559 = vmatprep.subr.bf16.mxu0 0
    %560 = vmatpush1.bf16.msra.mxu0 %v460
    %561 = vmatprep.subr.bf16.mxu0 0
    %562 = vmatpush1.bf16.msra.mxu0 %v461
    %563 = vmatprep.subr.bf16.mxu0 0
    %564 = vmatpush1.bf16.msra.mxu0 %v462
    %565 = vmatprep.subr.bf16.mxu0 0
    %566 = vmatpush1.bf16.msra.mxu0 %v463
    %567 = vmatprep.subr.bf16.mxu0 0
    %568 = vmatpush1.bf16.msra.mxu0 %v464
    %569 = vmatprep.mubr.bf16.mxu0 %v233
    %570 = vmatmul.mubr.bf16.gmra.mrb[0].mxu0 %v232
    %v571 = vpop.f32.mrb[0].mxu0
    %v572 = vadd.f32 %v532, %v571
    %v573 = vpop.f32.mrb[0].mxu0
    %v574 = vpop.f32.mrb[0].mxu0
    %v575 = vpop.f32.mrb[0].mxu0
    %576 = vdwg.mxu0
    %v577 = vmax.f32 %v572, 0.0
    %v578 = vld [vmem:[%s5] sm:$0x1]
    %s579 = sld [smem:[#allocation2]]
    %v580 = vstv %s579
    %581 = vmatprep.subr.mxu0 0.0
    %582 = vmatpush1.xpose.msra.mxu0 %v577
    %583 = vmatprep.subr.mxu0 0.0
    %584 = vmatpush1.xpose.msra.mxu0 0.0
    %585 = vmatprep.subr.mxu0 0.0
    %586 = vmatpush1.xpose.msra.mxu0 0.0
    %587 = vmatprep.subr.mxu0 0.0
    %588 = vmatpush1.xpose.msra.mxu0 0.0
    %589 = vmatprep.subr.mxu0 0.0
    %590 = vmatpush1.xpose.msra.mxu0 0.0
    %591 = vmatprep.subr.mxu0 0.0
    %592 = vmatpush1.xpose.msra.mxu0 0.0
    %593 = vmatprep.subr.mxu0 0.0
    %594 = vmatpush1.xpose.msra.mxu0 0.0
    %595 = vmatprep.subr.mxu0 0.0
    %596 = vmatpush1.xpose.msra.mxu0 0.0
    %597 = vmatprep.subr.mxu0 0.0
    %598 = vmatpush1.xpose.msra.mxu0 0.0
    %599 = vmatprep.subr.mxu0 0.0
    %600 = vmatpush1.xpose.msra.mxu0 0.0
    %601 = vmatprep.subr.mxu0 0.0
    %602 = vmatpush1.xpose.msra.mxu0 0.0
    %603 = vmatprep.subr.mxu0 0.0
    %604 = vmatpush1.xpose.msra.mxu0 0.0
    %605 = vmatprep.subr.mxu0 0.0
    %606 = vmatpush1.xpose.msra.mxu0 0.0
    %607 = vmatprep.subr.mxu0 0.0
    %608 = vmatpush1.xpose.msra.mxu0 0.0
    %609 = vmatprep.subr.mxu0 0.0
    %610 = vmatpush1.xpose.msra.mxu0 0.0
    %611 = vmatprep.subr.mxu0 0.0
    %612 = vmatpush1.xpose.msra.mxu0 0.0
    %613 = vmatprep.subr.mxu0 0.0
    %614 = vmatpush1.xpose.msra.mxu0 0.0
    %615 = vmatprep.subr.mxu0 0.0
    %616 = vmatpush1.xpose.msra.mxu0 0.0
    %617 = vmatprep.subr.mxu0 0.0
    %618 = vmatpush1.xpose.msra.mxu0 0.0
    %619 = vmatprep.subr.mxu0 0.0
    %620 = vmatpush1.xpose.msra.mxu0 0.0
    %621 = vmatprep.subr.mxu0 0.0
    %622 = vmatpush1.xpose.msra.mxu0 0.0
    %623 = vmatprep.subr.mxu0 0.0
    %624 = vmatpush1.xpose.msra.mxu0 0.0
    %625 = vmatprep.subr.mxu0 0.0
    %626 = vmatpush1.xpose.msra.mxu0 0.0
    %627 = vmatprep.subr.mxu0 0.0
    %628 = vmatpush1.xpose.msra.mxu0 0.0
    %629 = vmatprep.subr.mxu0 0.0
    %630 = vmatpush1.xpose.msra.mxu0 0.0
    %631 = vmatprep.subr.mxu0 0.0
    %632 = vmatpush1.xpose.msra.mxu0 0.0
    %633 = vmatprep.subr.mxu0 0.0
    %634 = vmatpush1.xpose.msra.mxu0 0.0
    %635 = vmatprep.subr.mxu0 0.0
    %636 = vmatpush1.xpose.msra.mxu0 0.0
    %637 = vmatprep.subr.mxu0 0.0
    %638 = vmatpush1.xpose.msra.mxu0 0.0
    %639 = vmatprep.subr.mxu0 0.0
    %640 = vmatpush1.xpose.msra.mxu0 0.0
    %641 = vmatprep.subr.mxu0 0.0
    %642 = vmatpush1.xpose.msra.mxu0 0.0
    %643 = vmatprep.subr.mxu0 0.0
    %644 = vmatpush1.xpose.msra.mxu0 0.0
    %645 = vmatprep.mubr.f32.mxu0 0.0
    %646 = vmatmul.mubr.f32.gmra.mrb[0].mxu0 %v578
    %v647 = vpop.f32.mrb[0].mxu0
    %v648 = vadd.f32 %v580, %v647
    %v649 = vpop.f32.mrb[0].mxu0
    %650 = vdwg.mxu0
    %vm651 = vcmask 57344
    %652 = vst.msk [vmem:[#allocation9] sm:$0x1] %vm651, %v648
    // Predicated region
    $region42: #{tpu_custom_call.1} parent=1 // pred_check
      _
    $region43: #{tpu_custom_call.1} parent=1 // pred_check_branch
      %654 = sbr.rel (0) target = $region45
    $region44: #{tpu_custom_call.1} parent=1 // pred_region
      %s656 = ssub.s32 16, 16
      %657 = vsyncadd [#allocation5], %s656
      %s659 = sshll.u32 [#allocation9], 4
      %s660 = int_to_ptr.vmem [resolvable:$true] %s659
      %662 = dma.vmem_to_hbm [thread:$0]  %s660, 16, %s7, [#allocation5]
    $region45: #{tpu_custom_call.1} parent=1 // pred_fallthru
      _
    // Predicated region
    $region46: #{tpu_custom_call.1} parent=1 // pred_check
      _
    $region47: #{tpu_custom_call.1} parent=1 // pred_check_branch
      %664 = sbr.rel (0) target = $region49
    $region48: #{tpu_custom_call.1} parent=1 // pred_region
      %665 = dma.done [#allocation5], 16
    $region49: #{tpu_custom_call.1} parent=1 // pred_fallthru
      _
    %666 = vsyncpa [#allocation4], 1
    %667 = vsyncpa [#allocation7], 1
    %668 = vsyncpa [#allocation5], 1

</llo_original>
